<compile_context>
chip_gen: v6e
topology: v6e:2x2x1
jax: 0.10.0
libtpu: 0.0.40
codegen_flags: <defaults>
</compile_context>

<pallas_src>
import jax
import jax.numpy as jnp
from jax.experimental import pallas as pl
from jax.experimental.pallas import tpu as pltpu

EPS = 1e-5  # PyTorch nn.LayerNorm default


def _round_up(x: int, m: int) -> int:
    return ((x + m - 1) // m) * m


def prenorm_linear_kernel(x_ref, gamma_ref, beta_ref, w_ref, bias_ref,
                          o_ref, y_ref):
    """Grid = (row tiles, feature tiles); feature axis is innermost.

    The LayerNorm of the current row tile is computed once (j == 0), cached as
    bf16 in `y_ref`, and reused for every feature tile j, so the VPU work is
    not redone per output column block. The matmul runs on the MXU with bf16
    operands and f32 accumulation.
    """
    @pl.when(pl.program_id(1) == 0)
    def _():
        x = x_ref[...].astype(jnp.float32)
        # One-pass statistics (fewer live (tm, D) f32 temporaries).
        mean = jnp.mean(x, axis=-1, keepdims=True)
        mean_sq = jnp.mean(x * x, axis=-1, keepdims=True)
        var = jnp.maximum(mean_sq - mean * mean, 0.0)
        rstd = jax.lax.rsqrt(var + EPS)
        y = (x - mean) * rstd * gamma_ref[...] + beta_ref[...]
        y_ref[...] = y.astype(jnp.bfloat16)

    # fn(normed): Linear(D -> tf) column tile.
    out = jnp.dot(y_ref[...], w_ref[...], preferred_element_type=jnp.float32)
    o_ref[...] = (out + bias_ref[...]).astype(o_ref.dtype)


def prenorm_linear(x, gamma, beta, w, bias, *, tm=None, tf_max=512):
    """x: (B, N, D) -> (B, N, F).  Fused LayerNorm(D) + Linear(D, F)."""
    B, N, D = x.shape
    Dw, F = w.shape
    assert Dw == D, "weight input dim must match LayerNorm dim"
    M = B * N

    in_bytes = jnp.dtype(x.dtype).itemsize
    out_dtype = x.dtype  # TODO(synk): emit bf16 here if downstream tolerates it
    out_bytes = jnp.dtype(out_dtype).itemsize

    # ---- VMEM budget (chip aware; falls back to the v7x-safe 64 MiB) ----
    try:
        vmem_cap = pltpu.get_tpu_info().vmem_capacity_bytes
    except Exception:
        vmem_cap = 64 * 1024 * 1024
    budget = max(32 * 1024 * 1024,
                 min(vmem_cap - 16 * 1024 * 1024, 96 * 1024 * 1024))

    # ---- Feature dim: pad to a lane-dense multiple of 128 ----
    F_pad = _round_up(F, 128)
    if F_pad * D * 2 <= 12 * 1024 * 1024 and F_pad <= 4096:
        tf = F_pad                       # whole bf16 weight resident, single j
    else:
        tf_cap = max(tf_max, 128)
        cands = [c for c in (1024, 512, 256, 128) if F_pad % c == 0 and c <= tf_cap]
        tf = cands[0] if cands else 128
    n_feat = F_pad // tf

    # ---- Row tile ----
    if tm is None:
        # 512 rows on 128-MiB-VMEM chips (v5e/v6e); 256 on v7x (64 MiB).
        tm = 512 if vmem_cap >= 96 * 1024 * 1024 else 256
    tm_eff = tm
    if M > 16:
        # Keep >= 2 row tiles so the "parallel" axis can feed both v7x cores.
        tm_eff = min(tm_eff, _round_up((M + 1) // 2, 8))
    if tm_eff >= M:
        tm_eff = M                       # one full-extent row block
    else:
        tm_eff = max(8, (tm_eff // 8) * 8)

    w_bufs = 1 if n_feat == 1 else 2     # invariant weight -> single buffer

    def footprint(tm_):
        return (2 * tm_ * D * in_bytes       # x blocks (double-buffered)
                + w_bufs * D * tf * 2        # bf16 weight block(s)
                + 2 * tm_ * tf * out_bytes   # out blocks
                + tm_ * D * 2                # cached normalized activations
                + 3 * tm_ * D * 4            # f32 LayerNorm temporaries
                + 2 * (2 * D + tf) * 4)      # gamma / beta / bias

    while tm_eff > 8 and footprint(tm_eff) > budget:
        nxt = max(8, ((tm_eff // 2) // 8) * 8)
        if nxt == tm_eff:
            break
        tm_eff = nxt

    n_rows = pl.cdiv(M, tm_eff)
    vmem_limit = int(max(32 * 1024 * 1024,
                         min(footprint(tm_eff) + 16 * 1024 * 1024,
                             vmem_cap - 8 * 1024 * 1024)))

    # ---- Operand prep (no row padding: ragged last row block is masked) ----
    x2 = x.reshape(M, D)
    gamma2 = gamma.reshape(1, D).astype(jnp.float32)
    beta2 = beta.reshape(1, D).astype(jnp.float32)
    w_bf = w.astype(jnp.bfloat16)        # cast once; halves weight HBM traffic
    bias2 = bias.reshape(1, F).astype(jnp.float32)
    if F_pad != F:
        w_bf = jnp.pad(w_bf, ((0, 0), (0, F_pad - F)))
        bias2 = jnp.pad(bias2, ((0, 0), (0, F_pad - F)))

    grid = (n_rows, n_feat)

    cost = pl.CostEstimate(
        flops=2 * M * D * F_pad + 8 * M * D,
        transcendentals=M,
        bytes_accessed=(M * D * in_bytes           # x read once per row tile
                        + n_rows * D * F_pad * 2   # weight streamed per row tile
                        + 2 * D * 4 + F_pad * 4    # gamma/beta/bias
                        + M * F_pad * out_bytes),  # output
    )

    def build(single_buffer_invariants: bool):
        def spec(shape, index_map, invariant):
            if single_buffer_invariants and invariant:
                return pl.BlockSpec(shape, index_map,
                                    pipeline_mode=pl.Buffered(1))
            return pl.BlockSpec(shape, index_map)

        return pl.pallas_call(
            prenorm_linear_kernel,
            out_shape=jax.ShapeDtypeStruct((M, F_pad), out_dtype),
            grid_spec=pltpu.PrefetchScalarGridSpec(
                num_scalar_prefetch=0,
                grid=grid,
                in_specs=[
                    pl.BlockSpec((tm_eff, D), lambda i, j: (i, 0)),       # x rows
                    spec((1, D), lambda i, j: (0, 0), True),              # gamma
                    spec((1, D), lambda i, j: (0, 0), True),              # beta
                    spec((D, tf), lambda i, j: (0, j), n_feat == 1),      # weight
                    spec((1, tf), lambda i, j: (0, j), n_feat == 1),      # bias
                ],
                out_specs=pl.BlockSpec((tm_eff, tf), lambda i, j: (i, j)),
                scratch_shapes=[pltpu.VMEM((tm_eff, D), jnp.bfloat16)],
            ),
            compiler_params=pltpu.CompilerParams(
                dimension_semantics=("parallel", "arbitrary"),
                vmem_limit_bytes=vmem_limit),
            cost_estimate=cost,
        )

    try:
        out2 = build(True)(x2, gamma2, beta2, w_bf, bias2)
    except Exception:
        # pipeline_mode=pl.Buffered(1) unsupported on this JAX: default specs.
        out2 = build(False)(x2, gamma2, beta2, w_bf, bias2)

    if F_pad != F:
        out2 = out2[:, :F]
    return out2.reshape(B, N, F)


def prenorm_linear_ref(x, gamma, beta, w, bias, matmul_dtype=jnp.float32):
    xf = x.astype(jnp.float32)
    mean = jnp.mean(xf, axis=-1, keepdims=True)
    var = jnp.mean((xf - mean) ** 2, axis=-1, keepdims=True)
    xn = (xf - mean) * jax.lax.rsqrt(var + EPS)
    y = xn * gamma + beta
    out = jnp.dot(y.astype(matmul_dtype), w.astype(matmul_dtype),
                  preferred_element_type=jnp.float32) + bias
    return out.astype(x.dtype)


if __name__ == "__main__":
    key = jax.random.PRNGKey(0)
    k1, k2, k3, k4, k5 = jax.random.split(key, 5)

    B, N, D = 2, 8, 32   # batch, tokens, dim
    F = D                # fn = Linear(dim, dim) (canonical transformer usage)

    x = jax.random.normal(k1, (B, N, D), dtype=jnp.float32)
    gamma = 1.0 + 0.1 * jax.random.normal(k2, (D,), dtype=jnp.float32)
    beta = 0.1 * jax.random.normal(k3, (D,), dtype=jnp.float32)
    w = jax.random.normal(k4, (D, F), dtype=jnp.float32) / jnp.sqrt(D)
    bias = 0.1 * jax.random.normal(k5, (F,), dtype=jnp.float32)

    out = jax.block_until_ready(prenorm_linear(x, gamma, beta, w, bias))
    assert out.shape == (B, N, F)

    # Tight check vs a reference that uses the same bf16 matmul operands.
    ref_bf16 = prenorm_linear_ref(x, gamma, beta, w, bias,
                                  matmul_dtype=jnp.bfloat16)
    assert jnp.allclose(out, ref_bf16, atol=2e-3, rtol=2e-3), \
        "mismatch vs bf16-matmul reference"

    # Loose check vs the pure-f32 reference (bf16 MXU inputs loosen agreement).
    ref_f32 = prenorm_linear_ref(x, gamma, beta, w, bias)
    assert jnp.allclose(out, ref_f32, atol=5e-2, rtol=5e-2), \
        "mismatch vs f32 reference"

    print("KERNEL_OK")
</pallas_src>

<mosaic_0001>
module attributes {stable_mosaic.version = 11 : i64} {
  func.func @prenorm_linear_kernel(%arg0: i32, %arg1: i32, %arg2: memref<16x32xf32, #tpu.memory_space<vmem>>, %arg3: memref<1x32xf32, #tpu.memory_space<vmem>>, %arg4: memref<1x32xf32, #tpu.memory_space<vmem>>, %arg5: memref<32x128xbf16, #tpu.memory_space<vmem>>, %arg6: memref<1x128xf32, #tpu.memory_space<vmem>>, %arg7: memref<16x128xf32, #tpu.memory_space<vmem>>, %arg8: memref<16x32xbf16, #tpu.memory_space<vmem>>) attributes {dimension_semantics = [#tpu.dimension_semantics<parallel>, #tpu.dimension_semantics<arbitrary>], iteration_bounds = array<i64: 1, 1>, scalar_prefetch = 0 : i64, scratch_operands = 1 : i64, tpu.core_type = #tpu.core_type<tc>, window_params = [{transform_indices = @transform_0, window_bounds = array<i64: 16, 32>}, {pipeline_mode = #tpu.pipeline_mode<synchronous>, transform_indices = @transform_1, window_bounds = array<i64: 1, 32>}, {pipeline_mode = #tpu.pipeline_mode<synchronous>, transform_indices = @transform_2, window_bounds = array<i64: 1, 32>}, {pipeline_mode = #tpu.pipeline_mode<synchronous>, transform_indices = @transform_3, window_bounds = array<i64: 32, 128>}, {pipeline_mode = #tpu.pipeline_mode<synchronous>, transform_indices = @transform_4, window_bounds = array<i64: 1, 128>}, {transform_indices = @transform_5, window_bounds = array<i64: 16, 128>}]} {
    %c0_i32 = arith.constant 0 : i32
    %0 = arith.cmpi eq, %arg1, %c0_i32 : i32
    %1 = arith.extui %0 : i1 to i32
    %c0_i32_0 = arith.constant 0 : i32
    %2 = arith.cmpi ne, %1, %c0_i32_0 : i32
    scf.if %2 {
      %c0_8 = arith.constant 0 : index
      %c0_9 = arith.constant 0 : index
      %10 = vector.load %arg2[%c0_8, %c0_9] : memref<16x32xf32, #tpu.memory_space<vmem>>, vector<16x32xf32>
      %cst_10 = arith.constant dense<0.000000e+00> : vector<16xf32>
      %11 = vector.multi_reduction <add>, %10, %cst_10 [1] : vector<16x32xf32> to vector<16xf32>
      %12 = vector.shape_cast %11 : vector<16xf32> to vector<16x1xf32>
      %cst_11 = arith.constant 3.200000e+01 : f32
      %13 = vector.broadcast %cst_11 : f32 to vector<16x1xf32>
      %14 = arith.divf %12, %13 : vector<16x1xf32>
      %15 = arith.mulf %10, %10 : vector<16x32xf32>
      %cst_12 = arith.constant dense<0.000000e+00> : vector<16xf32>
      %16 = vector.multi_reduction <add>, %15, %cst_12 [1] : vector<16x32xf32> to vector<16xf32>
      %17 = vector.shape_cast %16 : vector<16xf32> to vector<16x1xf32>
      %cst_13 = arith.constant 3.200000e+01 : f32
      %18 = vector.broadcast %cst_13 : f32 to vector<16x1xf32>
      %19 = arith.divf %17, %18 : vector<16x1xf32>
      %20 = arith.mulf %14, %14 : vector<16x1xf32>
      %21 = arith.subf %19, %20 : vector<16x1xf32>
      %cst_14 = arith.constant 0.000000e+00 : f32
      %22 = vector.broadcast %cst_14 : f32 to vector<16x1xf32>
      %23 = arith.maximumf %21, %22 : vector<16x1xf32>
      %cst_15 = arith.constant 9.99999974E-6 : f32
      %24 = vector.broadcast %cst_15 : f32 to vector<16x1xf32>
      %25 = arith.addf %23, %24 : vector<16x1xf32>
      %26 = math.rsqrt %25 : vector<16x1xf32>
      %27 = vector.broadcast %14 : vector<16x1xf32> to vector<16x32xf32>
      %28 = arith.subf %10, %27 : vector<16x32xf32>
      %29 = vector.broadcast %26 : vector<16x1xf32> to vector<16x32xf32>
      %30 = arith.mulf %28, %29 : vector<16x32xf32>
      %c0_16 = arith.constant 0 : index
      %c0_17 = arith.constant 0 : index
      %31 = vector.load %arg3[%c0_16, %c0_17] : memref<1x32xf32, #tpu.memory_space<vmem>>, vector<1x32xf32>
      %32 = vector.broadcast %31 : vector<1x32xf32> to vector<16x32xf32>
      %33 = arith.mulf %30, %32 : vector<16x32xf32>
      %c0_18 = arith.constant 0 : index
      %c0_19 = arith.constant 0 : index
      %34 = vector.load %arg4[%c0_18, %c0_19] : memref<1x32xf32, #tpu.memory_space<vmem>>, vector<1x32xf32>
      %35 = vector.broadcast %34 : vector<1x32xf32> to vector<16x32xf32>
      %36 = arith.addf %33, %35 : vector<16x32xf32>
      %37 = arith.truncf %36 : vector<16x32xf32> to vector<16x32xbf16>
      %c0_20 = arith.constant 0 : index
      %c0_21 = arith.constant 0 : index
      %38 = vector.load %arg8[%c0_20, %c0_21] : memref<16x32xbf16, #tpu.memory_space<vmem>>, vector<16x32xbf16>
      tpu.vector_store %arg8[%c0_20, %c0_21], %37 {strides = array<i32>} : memref<16x32xbf16, #tpu.memory_space<vmem>>, vector<16x32xbf16>,
    } else {
    }
    %c0 = arith.constant 0 : index
    %c0_1 = arith.constant 0 : index
    %3 = vector.load %arg8[%c0, %c0_1] : memref<16x32xbf16, #tpu.memory_space<vmem>>, vector<16x32xbf16>
    %c0_2 = arith.constant 0 : index
    %c0_3 = arith.constant 0 : index
    %4 = vector.load %arg5[%c0_2, %c0_3] : memref<32x128xbf16, #tpu.memory_space<vmem>>, vector<32x128xbf16>
    %cst = arith.constant dense<0.000000e+00> : vector<16x128xf32>
    %5 = tpu.matmul %3, %4, %cst {dimension_numbers = #tpu.dot_dimension_numbers<[1], [0], [0], [1], [0, 0, 1, 1], [], []>} : vector<16x32xbf16>, vector<32x128xbf16>, vector<16x128xf32> -> vector<16x128xf32>
    %c0_4 = arith.constant 0 : index
    %c0_5 = arith.constant 0 : index
    %6 = vector.load %arg6[%c0_4, %c0_5] : memref<1x128xf32, #tpu.memory_space<vmem>>, vector<1x128xf32>
    %7 = vector.broadcast %6 : vector<1x128xf32> to vector<16x128xf32>
    %8 = arith.addf %5, %7 : vector<16x128xf32>
    %c0_6 = arith.constant 0 : index
    %c0_7 = arith.constant 0 : index
    %9 = vector.load %arg7[%c0_6, %c0_7] : memref<16x128xf32, #tpu.memory_space<vmem>>, vector<16x128xf32>
    tpu.vector_store %arg7[%c0_6, %c0_7], %8 {strides = array<i32>} : memref<16x128xf32, #tpu.memory_space<vmem>>, vector<16x128xf32>,
    return
  }
  func.func @transform_0(%arg0: i32, %arg1: i32) -> (i32, i32) {
    %c0_i32 = arith.constant 0 : i32
    %c0_i32_0 = arith.constant 0 : i32
    return %arg0, %c0_i32 : i32, i32
  }
  func.func @transform_1(%arg0: i32, %arg1: i32) -> (i32, i32) {
    %c0_i32 = arith.constant 0 : i32
    %c0_i32_0 = arith.constant 0 : i32
    %c0_i32_1 = arith.constant 0 : i32
    return %c0_i32, %c0_i32_0 : i32, i32
  }
  func.func @transform_2(%arg0: i32, %arg1: i32) -> (i32, i32) {
    %c0_i32 = arith.constant 0 : i32
    %c0_i32_0 = arith.constant 0 : i32
    %c0_i32_1 = arith.constant 0 : i32
    return %c0_i32, %c0_i32_0 : i32, i32
  }
  func.func @transform_3(%arg0: i32, %arg1: i32) -> (i32, i32) {
    %c0_i32 = arith.constant 0 : i32
    %c0_i32_0 = arith.constant 0 : i32
    return %c0_i32, %arg1 : i32, i32
  }
  func.func @transform_4(%arg0: i32, %arg1: i32) -> (i32, i32) {
    %c0_i32 = arith.constant 0 : i32
    %c0_i32_0 = arith.constant 0 : i32
    return %c0_i32, %arg1 : i32, i32
  }
  func.func @transform_5(%arg0: i32, %arg1: i32) -> (i32, i32) {
    %c0_i32 = arith.constant 0 : i32
    return %arg0, %arg1 : i32, i32
  }
}

module attributes {stable_mosaic.version = 11 : i64} {
  func.func @prenorm_linear_kernel(%arg0: i32, %arg1: i32, %arg2: memref<16x32xf32, #tpu.memory_space<vmem>>, %arg3: memref<1x32xf32, #tpu.memory_space<vmem>>, %arg4: memref<1x32xf32, #tpu.memory_space<vmem>>, %arg5: memref<32x128xbf16, #tpu.memory_space<vmem>>, %arg6: memref<1x128xf32, #tpu.memory_space<vmem>>, %arg7: memref<16x128xf32, #tpu.memory_space<vmem>>, %arg8: memref<16x32xbf16, #tpu.memory_space<vmem>>) attributes {dimension_semantics = [#tpu.dimension_semantics<parallel>, #tpu.dimension_semantics<arbitrary>], iteration_bounds = array<i64: 1, 1>, scalar_prefetch = 0 : i64, scratch_operands = 1 : i64, tpu.core_type = #tpu.core_type<tc>, window_params = [{transform_indices = @transform_0, window_bounds = array<i64: 16, 32>}, {pipeline_mode = #tpu.pipeline_mode<synchronous>, transform_indices = @transform_1, window_bounds = array<i64: 1, 32>}, {pipeline_mode = #tpu.pipeline_mode<synchronous>, transform_indices = @transform_2, window_bounds = array<i64: 1, 32>}, {transform_indices = @transform_3, window_bounds = array<i64: 32, 128>}, {transform_indices = @transform_4, window_bounds = array<i64: 1, 128>}, {transform_indices = @transform_5, window_bounds = array<i64: 16, 128>}]} {
    %c0_i32 = arith.constant 0 : i32
    %0 = arith.cmpi eq, %arg1, %c0_i32 : i32
    %1 = arith.extui %0 : i1 to i32
    %c0_i32_0 = arith.constant 0 : i32
    %2 = arith.cmpi ne, %1, %c0_i32_0 : i32
    scf.if %2 {
      %c0_8 = arith.constant 0 : index
      %c0_9 = arith.constant 0 : index
      %10 = vector.load %arg2[%c0_8, %c0_9] : memref<16x32xf32, #tpu.memory_space<vmem>>, vector<16x32xf32>
      %cst_10 = arith.constant dense<0.000000e+00> : vector<16xf32>
      %11 = vector.multi_reduction <add>, %10, %cst_10 [1] : vector<16x32xf32> to vector<16xf32>
      %12 = vector.shape_cast %11 : vector<16xf32> to vector<16x1xf32>
      %cst_11 = arith.constant 3.200000e+01 : f32
      %13 = vector.broadcast %cst_11 : f32 to vector<16x1xf32>
      %14 = arith.divf %12, %13 : vector<16x1xf32>
      %15 = arith.mulf %10, %10 : vector<16x32xf32>
      %cst_12 = arith.constant dense<0.000000e+00> : vector<16xf32>
      %16 = vector.multi_reduction <add>, %15, %cst_12 [1] : vector<16x32xf32> to vector<16xf32>
      %17 = vector.shape_cast %16 : vector<16xf32> to vector<16x1xf32>
      %cst_13 = arith.constant 3.200000e+01 : f32
      %18 = vector.broadcast %cst_13 : f32 to vector<16x1xf32>
      %19 = arith.divf %17, %18 : vector<16x1xf32>
      %20 = arith.mulf %14, %14 : vector<16x1xf32>
      %21 = arith.subf %19, %20 : vector<16x1xf32>
      %cst_14 = arith.constant 0.000000e+00 : f32
      %22 = vector.broadcast %cst_14 : f32 to vector<16x1xf32>
      %23 = arith.maximumf %21, %22 : vector<16x1xf32>
      %cst_15 = arith.constant 9.99999974E-6 : f32
      %24 = vector.broadcast %cst_15 : f32 to vector<16x1xf32>
      %25 = arith.addf %23, %24 : vector<16x1xf32>
      %26 = math.rsqrt %25 : vector<16x1xf32>
      %27 = vector.broadcast %14 : vector<16x1xf32> to vector<16x32xf32>
      %28 = arith.subf %10, %27 : vector<16x32xf32>
      %29 = vector.broadcast %26 : vector<16x1xf32> to vector<16x32xf32>
      %30 = arith.mulf %28, %29 : vector<16x32xf32>
      %c0_16 = arith.constant 0 : index
      %c0_17 = arith.constant 0 : index
      %31 = vector.load %arg3[%c0_16, %c0_17] : memref<1x32xf32, #tpu.memory_space<vmem>>, vector<1x32xf32>
      %32 = vector.broadcast %31 : vector<1x32xf32> to vector<16x32xf32>
      %33 = arith.mulf %30, %32 : vector<16x32xf32>
      %c0_18 = arith.constant 0 : index
      %c0_19 = arith.constant 0 : index
      %34 = vector.load %arg4[%c0_18, %c0_19] : memref<1x32xf32, #tpu.memory_space<vmem>>, vector<1x32xf32>
      %35 = vector.broadcast %34 : vector<1x32xf32> to vector<16x32xf32>
      %36 = arith.addf %33, %35 : vector<16x32xf32>
      %37 = arith.truncf %36 : vector<16x32xf32> to vector<16x32xbf16>
      %c0_20 = arith.constant 0 : index
      %c0_21 = arith.constant 0 : index
      %38 = vector.load %arg8[%c0_20, %c0_21] : memref<16x32xbf16, #tpu.memory_space<vmem>>, vector<16x32xbf16>
      tpu.vector_store %arg8[%c0_20, %c0_21], %37 {strides = array<i32>} : memref<16x32xbf16, #tpu.memory_space<vmem>>, vector<16x32xbf16>,
    } else {
    }
    %c0 = arith.constant 0 : index
    %c0_1 = arith.constant 0 : index
    %3 = vector.load %arg8[%c0, %c0_1] : memref<16x32xbf16, #tpu.memory_space<vmem>>, vector<16x32xbf16>
    %c0_2 = arith.constant 0 : index
    %c0_3 = arith.constant 0 : index
    %4 = vector.load %arg5[%c0_2, %c0_3] : memref<32x128xbf16, #tpu.memory_space<vmem>>, vector<32x128xbf16>
    %cst = arith.constant dense<0.000000e+00> : vector<16x128xf32>
    %5 = tpu.matmul %3, %4, %cst {dimension_numbers = #tpu.dot_dimension_numbers<[1], [0], [0], [1], [0, 0, 1, 1], [], []>} : vector<16x32xbf16>, vector<32x128xbf16>, vector<16x128xf32> -> vector<16x128xf32>
    %c0_4 = arith.constant 0 : index
    %c0_5 = arith.constant 0 : index
    %6 = vector.load %arg6[%c0_4, %c0_5] : memref<1x128xf32, #tpu.memory_space<vmem>>, vector<1x128xf32>
    %7 = vector.broadcast %6 : vector<1x128xf32> to vector<16x128xf32>
    %8 = arith.addf %5, %7 : vector<16x128xf32>
    %c0_6 = arith.constant 0 : index
    %c0_7 = arith.constant 0 : index
    %9 = vector.load %arg7[%c0_6, %c0_7] : memref<16x128xf32, #tpu.memory_space<vmem>>, vector<16x128xf32>
    tpu.vector_store %arg7[%c0_6, %c0_7], %8 {strides = array<i32>} : memref<16x128xf32, #tpu.memory_space<vmem>>, vector<16x128xf32>,
    return
  }
  func.func @transform_0(%arg0: i32, %arg1: i32) -> (i32, i32) {
    %c0_i32 = arith.constant 0 : i32
    %c0_i32_0 = arith.constant 0 : i32
    return %arg0, %c0_i32 : i32, i32
  }
  func.func @transform_1(%arg0: i32, %arg1: i32) -> (i32, i32) {
    %c0_i32 = arith.constant 0 : i32
    %c0_i32_0 = arith.constant 0 : i32
    %c0_i32_1 = arith.constant 0 : i32
    return %c0_i32, %c0_i32_0 : i32, i32
  }
  func.func @transform_2(%arg0: i32, %arg1: i32) -> (i32, i32) {
    %c0_i32 = arith.constant 0 : i32
    %c0_i32_0 = arith.constant 0 : i32
    %c0_i32_1 = arith.constant 0 : i32
    return %c0_i32, %c0_i32_0 : i32, i32
  }
  func.func @transform_3(%arg0: i32, %arg1: i32) -> (i32, i32) {
    %c0_i32 = arith.constant 0 : i32
    %c0_i32_0 = arith.constant 0 : i32
    return %c0_i32, %arg1 : i32, i32
  }
  func.func @transform_4(%arg0: i32, %arg1: i32) -> (i32, i32) {
    %c0_i32 = arith.constant 0 : i32
    %c0_i32_0 = arith.constant 0 : i32
    return %c0_i32, %arg1 : i32, i32
  }
  func.func @transform_5(%arg0: i32, %arg1: i32) -> (i32, i32) {
    %c0_i32 = arith.constant 0 : i32
    return %arg0, %arg1 : i32, i32
  }
}

</mosaic_0001>

<llo_original>
// kernel: tpu_custom_call.1
$region0: #{tpu_custom_call.1}
  #allocation0 [shape = 'u32[]', space=smem, size = 0x4, offset = 0x4, fixed_abs, tag = 'smem constant byte address 0x4 - core index']
  #allocation1 [shape = 'u32[144,128]{1,0:T(1,128)}', space=vmem, size = 0x12000, scoped, tag = 'internal scratch']
  #allocation2 [shape = 'bf16[16,32]{1,0:T(8,128)(2,1)}', space=vmem, size = 0x1000, scoped, tag = 'scratch operand']
  %s0 = inlined_call_operand.hbm [shape: f32[16,32], index: 0, kind: input, shape index: {}]
  %s1 = inlined_call_operand.vmem [shape: f32[1,32], index: 1, kind: input, shape index: {}]
  %s2 = inlined_call_operand.vmem [shape: f32[1,32], index: 2, kind: input, shape index: {}]
  %s3 = inlined_call_operand.hbm [shape: bf16[32,128], index: 3, kind: input, shape index: {}]
  %s4 = inlined_call_operand.vmem [shape: f32[1,128], index: 4, kind: input, shape index: {}]
  %s5 = inlined_call_operand.hbm [shape: f32[16,128], index: 5, kind: output, shape index: {}]
  %s6 = sld [smem:[#allocation0]]
  $region42: #{tpu_custom_call.1} parent=0
    _
  %s8 = ssub.s32 1, %s6
  %s9 = scalar_select 0, %s8, %s6
  $region1: #{tpu_custom_call.1} parent=0
    #allocation3 [shape = 'u8[8192]{0}', space=vmem, size = 0x2000, scoped, tag = 'input window, operand 0, single buffered']
    #allocation4 [shape = 's32[1]{0}', space=sflag, size = 0x4, scoped, tag = 'scoped memory for tpu_custom_call.1']
    #allocation5 [shape = 's32[1]{0}', space=sflag, size = 0x4, scoped, tag = 'scoped memory for tpu_custom_call.1']
    #allocation6 [shape = 'u8[8192]{0}', space=vmem, size = 0x2000, scoped, tag = 'input window, operand 3, single buffered']
    #allocation7 [shape = 's32[1]{0}', space=sflag, size = 0x4, scoped, tag = 'scoped memory for tpu_custom_call.1']
    #allocation8 [shape = 'u8[8192]{0}', space=vmem, size = 0x2000, scoped, tag = 'output window, operand 0, single buffered']
    %10 = vsyncpa [#allocation4], 0
    %11 = vsyncpa [#allocation7], 0
    %12 = vsyncpa [#allocation5], 0
    // Predicated region
    $region2: #{tpu_custom_call.1} parent=1 // pred_check
      _
    $region3: #{tpu_custom_call.1} parent=1 // pred_check_branch
      %14 = sbr.rel (0) target = $region5
    $region4: #{tpu_custom_call.1} parent=1 // pred_region
      %s16 = ssub.s32 256, 256
      %17 = vsyncadd [#allocation4], %s16
      %s18 = sshll.u32 [#allocation3], 4
      %s19 = int_to_ptr.vmem [resolvable:$true] %s18
      %24 = dma.hbm_to_vmem [thread:$0]  %s0, 256, %s19, [#allocation4], 128, 128, 8
    $region5: #{tpu_custom_call.1} parent=1 // pred_fallthru
      _
    // Predicated region
    $region6: #{tpu_custom_call.1} parent=1 // pred_check
      _
    $region7: #{tpu_custom_call.1} parent=1 // pred_check_branch
      %26 = sbr.rel (0) target = $region9
    $region8: #{tpu_custom_call.1} parent=1 // pred_region
      _
    $region9: #{tpu_custom_call.1} parent=1 // pred_fallthru
      _
    // Predicated region
    $region10: #{tpu_custom_call.1} parent=1 // pred_check
      _
    $region11: #{tpu_custom_call.1} parent=1 // pred_check_branch
      %28 = sbr.rel (0) target = $region13
    $region12: #{tpu_custom_call.1} parent=1 // pred_region
      _
    $region13: #{tpu_custom_call.1} parent=1 // pred_fallthru
      _
    // Predicated region
    $region14: #{tpu_custom_call.1} parent=1 // pred_check
      _
    $region15: #{tpu_custom_call.1} parent=1 // pred_check_branch
      %30 = sbr.rel (0) target = $region17
    $region16: #{tpu_custom_call.1} parent=1 // pred_region
      %s32 = ssub.s32 256, 256
      %33 = vsyncadd [#allocation7], %s32
      %s34 = sshll.u32 [#allocation6], 4
      %s35 = int_to_ptr.vmem [resolvable:$true] %s34
      %40 = dma.hbm_to_vmem [thread:$0]  %s3, 256, %s35, [#allocation7], 64, 64, 4
    $region17: #{tpu_custom_call.1} parent=1 // pred_fallthru
      _
    // Predicated region
    $region18: #{tpu_custom_call.1} parent=1 // pred_check
      _
    $region19: #{tpu_custom_call.1} parent=1 // pred_check_branch
      %42 = sbr.rel (0) target = $region21
    $region20: #{tpu_custom_call.1} parent=1 // pred_region
      _
    $region21: #{tpu_custom_call.1} parent=1 // pred_fallthru
      _
    // Predicated region
    $region22: #{tpu_custom_call.1} parent=1 // pred_check
      _
    $region23: #{tpu_custom_call.1} parent=1 // pred_check_branch
      %44 = sbr.rel (0) target = $region25
    $region24: #{tpu_custom_call.1} parent=1 // pred_region
      %45 = dma.done [#allocation4], 256
    $region25: #{tpu_custom_call.1} parent=1 // pred_fallthru
      _
    // Predicated region
    $region26: #{tpu_custom_call.1} parent=1 // pred_check
      _
    $region27: #{tpu_custom_call.1} parent=1 // pred_check_branch
      %47 = sbr.rel (0) target = $region29
    $region28: #{tpu_custom_call.1} parent=1 // pred_region
      %48 = dma.done [#allocation7], 256
    $region29: #{tpu_custom_call.1} parent=1 // pred_fallthru
      _
    %p50 = scmp.eq.s32.totalorder 0, 0
    // Predicated region
    $region30: #{tpu_custom_call.1} parent=1 // pred_check
      %p51 = pneg %p50
    $region31: #{tpu_custom_call.1} parent=1 // pred_check_branch
      %53 = sbr.rel (%p51) target = $region33
    $region32: #{tpu_custom_call.1} parent=1 // pred_region
      %v54 = vld [vmem:[#allocation3] sm:$0xff]
      %v55 = vld [vmem:[#allocation3 + $0x8] sm:$0xff]
      %vm56 = vcmask 261120
      %v57 = vsel %vm56, %v54, 0.0
      %58 = vadd.xlane.f32.xlu0 %v57
      %v59 = vpop.xlane.xlu0 %58
      %v60 = vsel %vm56, %v55, 0.0
      %61 = vadd.xlane.f32.xlu0 %v60
      %v62 = vpop.xlane.xlu0 %61
      %v63 = vrcp.pop 32.0
      %v64 = vmul.f32 %v59, %v63
      %v65 = vmul.f32 %v62, %v63
      %v66 = vmul.f32 %v54, %v54
      %v67 = vmul.f32 %v55, %v55
      %v68 = vsel %vm56, %v66, 0.0
      %69 = vadd.xlane.f32.xlu0 %v68
      %v70 = vpop.xlane.xlu0 %69
      %v71 = vsel %vm56, %v67, 0.0
      %72 = vadd.xlane.f32.xlu0 %v71
      %v73 = vpop.xlane.xlu0 %72
      %v74 = vmul.f32 %v70, %v63
      %v75 = vmul.f32 %v73, %v63
      %v76 = vmul.f32 %v64, %v64
      %v77 = vmul.f32 %v65, %v65
      %v78 = vsub.f32 %v74, %v76
      %v79 = vsub.f32 %v75, %v77
      %v80 = vmax.f32 %v78, 0.0
      %v81 = vmax.f32 %v79, 0.0
      %v82 = vadd.f32 %v80, 1e-05
      %v83 = vadd.f32 %v81, 1e-05
      %v84 = vrsqrt.pop %v82
      %v85 = vrsqrt.pop %v83
      %v86 = vsub.f32 %v54, %v64
      %v87 = vsub.f32 %v55, %v65
      %v88 = vmul.f32 %v86, %v84
      %v89 = vmul.f32 %v87, %v85
      %v90 = vld [vmem:[%s1] sm:$0x1]
      %v92 = vlaneseq
      %v93 = vshrl.u32 %v92, 7
      %v94 = vsub.s32 0, %v93
      %v95 = vrot.slane %v90, %v94
      %v97 = vmul.f32 %v88, %v95
      %v98 = vmul.f32 %v89, %v95
      %v99 = vld [vmem:[%s2] sm:$0x1]
      %v101 = vlaneseq
      %v102 = vshrl.u32 %v101, 7
      %v103 = vsub.s32 0, %v102
      %v104 = vrot.slane %v99, %v103
      %v106 = vadd.f32 %v97, %v104
      %v107 = vadd.f32 %v98, %v104
      %v108 = vpack.c.bf16 %v107, %v106
      %v110 = vunpack.c.l.b16 %v108
      %v111 = vunpack.c.h.b16 %v108
      %v112 = vpack.c.b16 %v110, %v110
      %v113 = vpack.c.b16 %v111, %v111
      %vm116 = vcmask 257024
      %117 = vst.msk [vmem:[#allocation2] sm:$0xf] %vm116, %v112
      %118 = vst.msk [vmem:[#allocation2 + $0x4] sm:$0xf] %vm116, %v113
    $region33: #{tpu_custom_call.1} parent=1 // pred_fallthru
      _
    %v119 = vld [vmem:[#allocation2] sm:$0xf]
    %v120 = vld [vmem:[#allocation2 + $0x4] sm:$0xf]
    %v121 = vld [vmem:[#allocation6] sm:$0xf]
    %v122 = vld [vmem:[#allocation6 + $0x4] sm:$0xf]
    %v123 = vld [vmem:[#allocation6 + $0x8] sm:$0xf]
    %v124 = vld [vmem:[#allocation6 + $0xc] sm:$0xf]
    %v125 = vld [vmem:[%s4] sm:$0x1]
    %v127 = vlaneseq
    %v128 = vshrl.u32 %v127, 7
    %v129 = vsub.s32 0, %v128
    %v130 = vrot.slane %v125, %v129
    %v134 = vunpack.c.l.b16 %v119
    %v135 = vunpack.c.l.b16 %v120
    %v136 = vpack.c.b16 %v135, %v134
    %v141 = vunpack.c.l.b16 %v121
    %v142 = vunpack.c.l.b16 %v122
    %v143 = vunpack.c.l.b16 %v123
    %v144 = vunpack.c.l.b16 %v124
    %v145 = vpack.c.b16 %v142, %v141
    %v146 = vpack.c.b16 %v144, %v143
    %vm149 = vcmask 261120
    %v151 = vsel %vm149, %v136, 0
    %153 = vmatprep.subr.bf16.mxu0 0
    %154 = vmatpush1.bf16.msra.mxu0 0
    %155 = vmatprep.subr.bf16.mxu0 0
    %156 = vmatpush1.bf16.msra.mxu0 0
    %157 = vmatprep.subr.bf16.mxu0 0
    %158 = vmatpush1.bf16.msra.mxu0 0
    %159 = vmatprep.subr.bf16.mxu0 0
    %160 = vmatpush1.bf16.msra.mxu0 0
    %161 = vmatprep.subr.bf16.mxu0 0
    %162 = vmatpush1.bf16.msra.mxu0 0
    %163 = vmatprep.subr.bf16.mxu0 0
    %164 = vmatpush1.bf16.msra.mxu0 0
    %165 = vmatprep.subr.bf16.mxu0 0
    %166 = vmatpush1.bf16.msra.mxu0 %v146
    %167 = vmatprep.subr.bf16.mxu0 0
    %168 = vmatpush1.bf16.msra.mxu0 %v145
    %169 = vmatprep.subr.bf16.mxu0 0
    %170 = vmatpush2.bf16.msra.mxu0 0
    %171 = vmatprep.subr.bf16.mxu0 0
    %172 = vmatpush2.bf16.msra.mxu0 0
    %173 = vmatprep.subr.bf16.mxu0 0
    %174 = vmatpush2.bf16.msra.mxu0 0
    %175 = vmatprep.subr.bf16.mxu0 0
    %176 = vmatpush2.bf16.msra.mxu0 0
    %177 = vmatprep.subr.bf16.mxu0 0
    %178 = vmatpush2.bf16.msra.mxu0 0
    %179 = vmatprep.subr.bf16.mxu0 0
    %180 = vmatpush2.bf16.msra.mxu0 0
    %181 = vmatprep.subr.bf16.mxu0 0
    %182 = vmatpush2.bf16.msra.mxu0 0
    %183 = vmatprep.subr.bf16.mxu0 0
    %184 = vmatpush2.bf16.msra.mxu0 0
    %185 = vmatprep.mubr.bf16.mxu0 0
    %186 = vmatmul.mubr.bf16.gmra.mxu0 %v151
    %v187 = vpop.f32.mrf.mxu0
    %v188 = vadd.f32 %v130, %v187
    %v189 = vpop.f32.mrf.mxu0
    %v190 = vpop.f32.mrf.mxu0
    %v191 = vadd.f32 %v130, %v190
    %v192 = vpop.f32.mrf.mxu0
    %193 = vdwg.mxu0
    %194 = vst [vmem:[#allocation8] sm:$0xff] %v188
    %195 = vst [vmem:[#allocation8 + $0x8] sm:$0xff] %v191
    // Predicated region
    $region34: #{tpu_custom_call.1} parent=1 // pred_check
      _
    $region35: #{tpu_custom_call.1} parent=1 // pred_check_branch
      %197 = sbr.rel (0) target = $region37
    $region36: #{tpu_custom_call.1} parent=1 // pred_region
      %s199 = ssub.s32 256, 256
      %200 = vsyncadd [#allocation5], %s199
      %s201 = sshll.u32 [#allocation8], 4
      %s202 = int_to_ptr.vmem [resolvable:$true] %s201
      %207 = dma.vmem_to_hbm [thread:$0]  %s202, 256, %s5, [#allocation5], 128, 128, 8
    $region37: #{tpu_custom_call.1} parent=1 // pred_fallthru
      _
    // Predicated region
    $region38: #{tpu_custom_call.1} parent=1 // pred_check
      _
    $region39: #{tpu_custom_call.1} parent=1 // pred_check_branch
      %209 = sbr.rel (0) target = $region41
    $region40: #{tpu_custom_call.1} parent=1 // pred_region
      %210 = dma.done [#allocation5], 256
    $region41: #{tpu_custom_call.1} parent=1 // pred_fallthru
      _
    %211 = vsyncpa [#allocation4], 1
    %212 = vsyncpa [#allocation7], 1
    %213 = vsyncpa [#allocation5], 1

// kernel: tpu_custom_call.1
$region0: #{tpu_custom_call.1}
  #allocation0 [shape = 'u32[]', space=smem, size = 0x4, offset = 0x4, fixed_abs, tag = 'smem constant byte address 0x4 - core index']
  #allocation1 [shape = 'u32[144,128]{1,0:T(1,128)}', space=vmem, size = 0x12000, scoped, tag = 'internal scratch']
  #allocation2 [shape = 'bf16[16,32]{1,0:T(8,128)(2,1)}', space=vmem, size = 0x1000, scoped, tag = 'scratch operand']
  %s0 = inlined_call_operand.hbm [shape: f32[16,32], index: 0, kind: input, shape index: {}]
  %s1 = inlined_call_operand.vmem [shape: f32[1,32], index: 1, kind: input, shape index: {}]
  %s2 = inlined_call_operand.vmem [shape: f32[1,32], index: 2, kind: input, shape index: {}]
  %s3 = inlined_call_operand.hbm [shape: bf16[32,128], index: 3, kind: input, shape index: {}]
  %s4 = inlined_call_operand.vmem [shape: f32[1,128], index: 4, kind: input, shape index: {}]
  %s5 = inlined_call_operand.hbm [shape: f32[16,128], index: 5, kind: output, shape index: {}]
  %s6 = sld [smem:[#allocation0]]
  $region42: #{tpu_custom_call.1} parent=0
    _
  %s8 = ssub.s32 1, %s6
  %s9 = scalar_select 0, %s8, %s6
  $region1: #{tpu_custom_call.1} parent=0
    #allocation3 [shape = 'u8[8192]{0}', space=vmem, size = 0x2000, scoped, tag = 'input window, operand 0, single buffered']
    #allocation4 [shape = 's32[1]{0}', space=sflag, size = 0x4, scoped, tag = 'scoped memory for tpu_custom_call.1']
    #allocation5 [shape = 's32[1]{0}', space=sflag, size = 0x4, scoped, tag = 'scoped memory for tpu_custom_call.1']
    #allocation6 [shape = 'u8[8192]{0}', space=vmem, size = 0x2000, scoped, tag = 'input window, operand 3, single buffered']
    #allocation7 [shape = 's32[1]{0}', space=sflag, size = 0x4, scoped, tag = 'scoped memory for tpu_custom_call.1']
    #allocation8 [shape = 'u8[8192]{0}', space=vmem, size = 0x2000, scoped, tag = 'output window, operand 0, single buffered']
    %10 = vsyncpa [#allocation4], 0
    %11 = vsyncpa [#allocation7], 0
    %12 = vsyncpa [#allocation5], 0
    // Predicated region
    $region2: #{tpu_custom_call.1} parent=1 // pred_check
      _
    $region3: #{tpu_custom_call.1} parent=1 // pred_check_branch
      %14 = sbr.rel (0) target = $region5
    $region4: #{tpu_custom_call.1} parent=1 // pred_region
      %s16 = ssub.s32 256, 256
      %17 = vsyncadd [#allocation4], %s16
      %s18 = sshll.u32 [#allocation3], 4
      %s19 = int_to_ptr.vmem [resolvable:$true] %s18
      %24 = dma.hbm_to_vmem [thread:$0]  %s0, 256, %s19, [#allocation4], 128, 128, 8
    $region5: #{tpu_custom_call.1} parent=1 // pred_fallthru
      _
    // Predicated region
    $region6: #{tpu_custom_call.1} parent=1 // pred_check
      _
    $region7: #{tpu_custom_call.1} parent=1 // pred_check_branch
      %26 = sbr.rel (0) target = $region9
    $region8: #{tpu_custom_call.1} parent=1 // pred_region
      _
    $region9: #{tpu_custom_call.1} parent=1 // pred_fallthru
      _
    // Predicated region
    $region10: #{tpu_custom_call.1} parent=1 // pred_check
      _
    $region11: #{tpu_custom_call.1} parent=1 // pred_check_branch
      %28 = sbr.rel (0) target = $region13
    $region12: #{tpu_custom_call.1} parent=1 // pred_region
      _
    $region13: #{tpu_custom_call.1} parent=1 // pred_fallthru
      _
    // Predicated region
    $region14: #{tpu_custom_call.1} parent=1 // pred_check
      _
    $region15: #{tpu_custom_call.1} parent=1 // pred_check_branch
      %30 = sbr.rel (0) target = $region17
    $region16: #{tpu_custom_call.1} parent=1 // pred_region
      %s32 = ssub.s32 256, 256
      %33 = vsyncadd [#allocation7], %s32
      %s34 = sshll.u32 [#allocation6], 4
      %s35 = int_to_ptr.vmem [resolvable:$true] %s34
      %40 = dma.hbm_to_vmem [thread:$0]  %s3, 256, %s35, [#allocation7], 64, 64, 4
    $region17: #{tpu_custom_call.1} parent=1 // pred_fallthru
      _
    // Predicated region
    $region18: #{tpu_custom_call.1} parent=1 // pred_check
      _
    $region19: #{tpu_custom_call.1} parent=1 // pred_check_branch
      %42 = sbr.rel (0) target = $region21
    $region20: #{tpu_custom_call.1} parent=1 // pred_region
      _
    $region21: #{tpu_custom_call.1} parent=1 // pred_fallthru
      _
    // Predicated region
    $region22: #{tpu_custom_call.1} parent=1 // pred_check
      _
    $region23: #{tpu_custom_call.1} parent=1 // pred_check_branch
      %44 = sbr.rel (0) target = $region25
    $region24: #{tpu_custom_call.1} parent=1 // pred_region
      %45 = dma.done [#allocation4], 256
    $region25: #{tpu_custom_call.1} parent=1 // pred_fallthru
      _
    // Predicated region
    $region26: #{tpu_custom_call.1} parent=1 // pred_check
      _
    $region27: #{tpu_custom_call.1} parent=1 // pred_check_branch
      %47 = sbr.rel (0) target = $region29
    $region28: #{tpu_custom_call.1} parent=1 // pred_region
      %48 = dma.done [#allocation7], 256
    $region29: #{tpu_custom_call.1} parent=1 // pred_fallthru
      _
    %p50 = scmp.eq.s32.totalorder 0, 0
    // Predicated region
    $region30: #{tpu_custom_call.1} parent=1 // pred_check
      %p51 = pneg %p50
    $region31: #{tpu_custom_call.1} parent=1 // pred_check_branch
      %53 = sbr.rel (%p51) target = $region33
    $region32: #{tpu_custom_call.1} parent=1 // pred_region
      %v54 = vld [vmem:[#allocation3] sm:$0xff]
      %v55 = vld [vmem:[#allocation3 + $0x8] sm:$0xff]
      %vm56 = vcmask 261120
      %v57 = vsel %vm56, %v54, 0.0
      %58 = vadd.xlane.f32.xlu0 %v57
      %v59 = vpop.xlane.xlu0 %58
      %v60 = vsel %vm56, %v55, 0.0
      %61 = vadd.xlane.f32.xlu0 %v60
      %v62 = vpop.xlane.xlu0 %61
      %v63 = vrcp.pop 32.0
      %v64 = vmul.f32 %v59, %v63
      %v65 = vmul.f32 %v62, %v63
      %v66 = vmul.f32 %v54, %v54
      %v67 = vmul.f32 %v55, %v55
      %v68 = vsel %vm56, %v66, 0.0
      %69 = vadd.xlane.f32.xlu0 %v68
      %v70 = vpop.xlane.xlu0 %69
      %v71 = vsel %vm56, %v67, 0.0
      %72 = vadd.xlane.f32.xlu0 %v71
      %v73 = vpop.xlane.xlu0 %72
      %v74 = vmul.f32 %v70, %v63
      %v75 = vmul.f32 %v73, %v63
      %v76 = vmul.f32 %v64, %v64
      %v77 = vmul.f32 %v65, %v65
      %v78 = vsub.f32 %v74, %v76
      %v79 = vsub.f32 %v75, %v77
      %v80 = vmax.f32 %v78, 0.0
      %v81 = vmax.f32 %v79, 0.0
      %v82 = vadd.f32 %v80, 1e-05
      %v83 = vadd.f32 %v81, 1e-05
      %v84 = vrsqrt.pop %v82
      %v85 = vrsqrt.pop %v83
      %v86 = vsub.f32 %v54, %v64
      %v87 = vsub.f32 %v55, %v65
      %v88 = vmul.f32 %v86, %v84
      %v89 = vmul.f32 %v87, %v85
      %v90 = vld [vmem:[%s1] sm:$0x1]
      %v92 = vlaneseq
      %v93 = vshrl.u32 %v92, 7
      %v94 = vsub.s32 0, %v93
      %v95 = vrot.slane %v90, %v94
      %v97 = vmul.f32 %v88, %v95
      %v98 = vmul.f32 %v89, %v95
      %v99 = vld [vmem:[%s2] sm:$0x1]
      %v101 = vlaneseq
      %v102 = vshrl.u32 %v101, 7
      %v103 = vsub.s32 0, %v102
      %v104 = vrot.slane %v99, %v103
      %v106 = vadd.f32 %v97, %v104
      %v107 = vadd.f32 %v98, %v104
      %v108 = vpack.c.bf16 %v107, %v106
      %v110 = vunpack.c.l.b16 %v108
      %v111 = vunpack.c.h.b16 %v108
      %v112 = vpack.c.b16 %v110, %v110
      %v113 = vpack.c.b16 %v111, %v111
      %vm116 = vcmask 257024
      %117 = vst.msk [vmem:[#allocation2] sm:$0xf] %vm116, %v112
      %118 = vst.msk [vmem:[#allocation2 + $0x4] sm:$0xf] %vm116, %v113
    $region33: #{tpu_custom_call.1} parent=1 // pred_fallthru
      _
    %v119 = vld [vmem:[#allocation2] sm:$0xf]
    %v120 = vld [vmem:[#allocation2 + $0x4] sm:$0xf]
    %v121 = vld [vmem:[#allocation6] sm:$0xf]
    %v122 = vld [vmem:[#allocation6 + $0x4] sm:$0xf]
    %v123 = vld [vmem:[#allocation6 + $0x8] sm:$0xf]
    %v124 = vld [vmem:[#allocation6 + $0xc] sm:$0xf]
    %v125 = vld [vmem:[%s4] sm:$0x1]
    %v127 = vlaneseq
    %v128 = vshrl.u32 %v127, 7
    %v129 = vsub.s32 0, %v128
    %v130 = vrot.slane %v125, %v129
    %v134 = vunpack.c.l.b16 %v119
    %v135 = vunpack.c.l.b16 %v120
    %v136 = vpack.c.b16 %v135, %v134
    %v141 = vunpack.c.l.b16 %v121
    %v142 = vunpack.c.l.b16 %v122
    %v143 = vunpack.c.l.b16 %v123
    %v144 = vunpack.c.l.b16 %v124
    %v145 = vpack.c.b16 %v142, %v141
    %v146 = vpack.c.b16 %v144, %v143
    %vm149 = vcmask 261120
    %v151 = vsel %vm149, %v136, 0
    %153 = vmatprep.subr.bf16.mxu0 0
    %154 = vmatpush1.bf16.msra.mxu0 0
    %155 = vmatprep.subr.bf16.mxu0 0
    %156 = vmatpush1.bf16.msra.mxu0 0
    %157 = vmatprep.subr.bf16.mxu0 0
    %158 = vmatpush1.bf16.msra.mxu0 0
    %159 = vmatprep.subr.bf16.mxu0 0
    %160 = vmatpush1.bf16.msra.mxu0 0
    %161 = vmatprep.subr.bf16.mxu0 0
    %162 = vmatpush1.bf16.msra.mxu0 0
    %163 = vmatprep.subr.bf16.mxu0 0
    %164 = vmatpush1.bf16.msra.mxu0 0
    %165 = vmatprep.subr.bf16.mxu0 0
    %166 = vmatpush1.bf16.msra.mxu0 %v146
    %167 = vmatprep.subr.bf16.mxu0 0
    %168 = vmatpush1.bf16.msra.mxu0 %v145
    %169 = vmatprep.subr.bf16.mxu0 0
    %170 = vmatpush2.bf16.msra.mxu0 0
    %171 = vmatprep.subr.bf16.mxu0 0
    %172 = vmatpush2.bf16.msra.mxu0 0
    %173 = vmatprep.subr.bf16.mxu0 0
    %174 = vmatpush2.bf16.msra.mxu0 0
    %175 = vmatprep.subr.bf16.mxu0 0
    %176 = vmatpush2.bf16.msra.mxu0 0
    %177 = vmatprep.subr.bf16.mxu0 0
    %178 = vmatpush2.bf16.msra.mxu0 0
    %179 = vmatprep.subr.bf16.mxu0 0
    %180 = vmatpush2.bf16.msra.mxu0 0
    %181 = vmatprep.subr.bf16.mxu0 0
    %182 = vmatpush2.bf16.msra.mxu0 0
    %183 = vmatprep.subr.bf16.mxu0 0
    %184 = vmatpush2.bf16.msra.mxu0 0
    %185 = vmatprep.mubr.bf16.mxu0 0
    %186 = vmatmul.mubr.bf16.gmra.mxu0 %v151
    %v187 = vpop.f32.mrf.mxu0
    %v188 = vadd.f32 %v130, %v187
    %v189 = vpop.f32.mrf.mxu0
    %v190 = vpop.f32.mrf.mxu0
    %v191 = vadd.f32 %v130, %v190
    %v192 = vpop.f32.mrf.mxu0
    %193 = vdwg.mxu0
    %194 = vst [vmem:[#allocation8] sm:$0xff] %v188
    %195 = vst [vmem:[#allocation8 + $0x8] sm:$0xff] %v191
    // Predicated region
    $region34: #{tpu_custom_call.1} parent=1 // pred_check
      _
    $region35: #{tpu_custom_call.1} parent=1 // pred_check_branch
      %197 = sbr.rel (0) target = $region37
    $region36: #{tpu_custom_call.1} parent=1 // pred_region
      %s199 = ssub.s32 256, 256
      %200 = vsyncadd [#allocation5], %s199
      %s201 = sshll.u32 [#allocation8], 4
      %s202 = int_to_ptr.vmem [resolvable:$true] %s201
      %207 = dma.vmem_to_hbm [thread:$0]  %s202, 256, %s5, [#allocation5], 128, 128, 8
    $region37: #{tpu_custom_call.1} parent=1 // pred_fallthru
      _
    // Predicated region
    $region38: #{tpu_custom_call.1} parent=1 // pred_check
      _
    $region39: #{tpu_custom_call.1} parent=1 // pred_check_branch
      %209 = sbr.rel (0) target = $region41
    $region40: #{tpu_custom_call.1} parent=1 // pred_region
      %210 = dma.done [#allocation5], 256
    $region41: #{tpu_custom_call.1} parent=1 // pred_fallthru
      _
    %211 = vsyncpa [#allocation4], 1
    %212 = vsyncpa [#allocation7], 1
    %213 = vsyncpa [#allocation5], 1

</llo_original>
